<compile_context>
chip_gen: v6e
topology: v6e:2x2x1
jax: 0.10.0
libtpu: 0.0.40
codegen_flags: <defaults>
</compile_context>

<pallas_src>
import math
from functools import partial

import jax
import jax.numpy as jnp
from jax.experimental import pallas as pl
from jax.experimental.pallas import tpu as pltpu

_LANES = 128
_HALF_LOG_2PI = 0.5 * math.log(2.0 * math.pi)
# Below this element count the fused XLA elementwise expression beats the
# Pallas launch + layout plumbing outright.
_MIN_PALLAS_ELEMS = 256 * 1024


def _cdiv(a, b):
    return -(-a // b)


def _round_up(a, b):
    return _cdiv(a, b) * b


def _sublane_multiple(dtype):
    # Sub-32-bit dtypes pack along sublanes: bf16 -> 16, int8/fp8 -> 32.
    return max(8, 32 // jnp.dtype(dtype).itemsize)


def _prior_constants(std):
    std = float(std)
    neg_half_inv_var = -0.5 / (std * std)
    neg_log_norm = -(math.log(std) + _HALF_LOG_2PI)
    return neg_half_inv_var, neg_log_norm


# ----------------------------------------------------------------------
# Kernels
# ----------------------------------------------------------------------
def _log_prob_kernel(x_ref, out_ref, *, neg_half_inv_var, neg_log_norm):
    # In-kernel cast: native-dtype (e.g. bf16) streaming halves read traffic;
    # f32 compute keeps v5e (no bf16 VALU) happy.
    x = x_ref[...].astype(jnp.float32)
    out_ref[...] = (x * x * neg_half_inv_var + neg_log_norm).astype(out_ref.dtype)


def _log_prob_sum_kernel(x_ref, out_ref, *, neg_half_inv_var, sum_offset):
    x = x_ref[...].astype(jnp.float32)
    s = jnp.sum(x * x, axis=-1, keepdims=True)
    out_ref[...] = (s * neg_half_inv_var + sum_offset).astype(out_ref.dtype)


# ----------------------------------------------------------------------
# Elementwise log N(x; 0, std)
# ----------------------------------------------------------------------
def prior_log_prob(x, std, *, tile_rows=8192, out_dtype=None,
                   min_pallas_elems=_MIN_PALLAS_ELEMS):
    """Elementwise log-density of Normal(0, std) at x.

    Large inputs stream through a Pallas kernel over a lane-dense (rows, 128)
    slab; small inputs use a fused jnp expression (no Pallas launch).
    """
    if out_dtype is None:
        out_dtype = x.dtype
    neg_half_inv_var, neg_log_norm = _prior_constants(std)

    total = int(x.size)
    if total == 0:
        return jnp.zeros(x.shape, out_dtype)
    if total < min_pallas_elems:
        xf = x.astype(jnp.float32)
        return (xf * xf * neg_half_inv_var + neg_log_norm).astype(out_dtype)

    orig_shape = x.shape
    sub = max(_sublane_multiple(x.dtype), _sublane_multiple(out_dtype))

    # Lane-dense slab. Aligned case: free contiguous reshape, no pad, no slice.
    pad = (-total) % (sub * _LANES)
    if pad:
        x2d = jnp.pad(jnp.ravel(x), (0, pad)).reshape(-1, _LANES)
    else:
        x2d = jnp.reshape(x, (-1, _LANES))
    rows = x2d.shape[0]

    # Tile: multiple of `sub` sublanes; capped so large inputs get >=4 grid
    # steps (v7x megacore sharding). Ragged last block is handled by the grid.
    t_rows = min(int(tile_rows), _round_up(_cdiv(rows, 4), sub))
    t_rows = max(_round_up(t_rows, sub), sub)
    grid = (_cdiv(rows, t_rows),)

    in_item = jnp.dtype(x.dtype).itemsize
    out_item = jnp.dtype(out_dtype).itemsize
    in_bytes = rows * _LANES * in_item
    out_bytes = rows * _LANES * out_item
    tile_bytes = t_rows * _LANES * (in_item + out_item)
    vmem_limit = min(2 * tile_bytes + (4 << 20), 100 << 20)

    out2d = pl.pallas_call(
        partial(_log_prob_kernel,
                neg_half_inv_var=neg_half_inv_var,
                neg_log_norm=neg_log_norm),
        out_shape=jax.ShapeDtypeStruct((rows, _LANES), out_dtype),
        grid=grid,
        in_specs=[pl.BlockSpec((t_rows, _LANES), lambda i: (i, 0))],
        out_specs=pl.BlockSpec((t_rows, _LANES), lambda i: (i, 0)),
        compiler_params=pltpu.CompilerParams(
            dimension_semantics=("parallel",),
            vmem_limit_bytes=vmem_limit),
        cost_estimate=pl.CostEstimate(
            flops=2 * total, transcendentals=0,
            bytes_accessed=in_bytes + out_bytes),
    )(x2d)

    if pad:
        return out2d.reshape(-1)[:total].reshape(orig_shape)
    return out2d.reshape(orig_shape)


# ----------------------------------------------------------------------
# Fused reduction: sum_d log N(x[..., d]; 0, std)  (for ELBO / KL consumers)
# ----------------------------------------------------------------------
def prior_log_prob_sum(x, std, *, tile_rows=1024, out_dtype=jnp.float32,
                       min_pallas_elems=_MIN_PALLAS_ELEMS):
    """Sum of the prior log-density over the last (latent) axis, fused in-kernel.

    Avoids writing the full elementwise log-prob to HBM and re-reading it for
    the reduction. Returns shape x.shape[:-1].
    """
    neg_half_inv_var, neg_log_norm = _prior_constants(std)
    *lead, dim = x.shape
    out_shape = tuple(lead)
    total = int(x.size)
    sum_offset = float(dim) * neg_log_norm

    if total == 0 or dim == 0:
        return jnp.full(out_shape, sum_offset if dim else 0.0, out_dtype)
    if total < min_pallas_elems:
        xf = x.astype(jnp.float32)
        s = jnp.sum(xf * xf, axis=-1) * neg_half_inv_var + sum_offset
        return s.astype(out_dtype)

    x2d = x.reshape(-1, dim)
    rows = x2d.shape[0]
    sub = _sublane_multiple(x.dtype)
    in_item = jnp.dtype(x.dtype).itemsize

    t_rows = min(int(tile_rows), _round_up(_cdiv(rows, 4), sub))
    # Keep the double-buffered input working set within a conservative budget.
    budget = 24 << 20
    max_rows_by_vmem = max(sub, ((budget // (2 * dim * in_item)) // sub) * sub)
    t_rows = min(t_rows, max_rows_by_vmem)
    t_rows = max(_round_up(t_rows, sub), sub)
    grid = (_cdiv(rows, t_rows),)

    in_bytes = rows * dim * in_item
    out_bytes = rows * jnp.dtype(out_dtype).itemsize
    vmem_limit = min(2 * t_rows * dim * in_item + (4 << 20), 100 << 20)

    out2d = pl.pallas_call(
        partial(_log_prob_sum_kernel,
                neg_half_inv_var=neg_half_inv_var,
                sum_offset=sum_offset),
        out_shape=jax.ShapeDtypeStruct((rows, 1), out_dtype),
        grid=grid,
        in_specs=[pl.BlockSpec((t_rows, dim), lambda i: (i, 0))],
        out_specs=pl.BlockSpec((t_rows, 1), lambda i: (i, 0)),
        compiler_params=pltpu.CompilerParams(
            dimension_semantics=("parallel",),
            vmem_limit_bytes=vmem_limit),
        cost_estimate=pl.CostEstimate(
            flops=3 * total, transcendentals=0,
            bytes_accessed=in_bytes + out_bytes),
    )(x2d)

    return out2d.reshape(out_shape)


# ----------------------------------------------------------------------
# Glue: prior Normal "distribution" + Prior module mirror.
# ----------------------------------------------------------------------
class PriorNormal:
    """Normal(0, std) over a (batch_size, z1_dim) latent."""

    def __init__(self, batch_size, z1_dim, std=1.0, dtype=jnp.float32):
        self.batch_size = int(batch_size)
        self.z1_dim = int(z1_dim)
        self.std = float(std)
        self.dtype = dtype
        self._mean = None
        self._stddev = None

    @property
    def mean(self):
        if self._mean is None:
            self._mean = jnp.zeros((self.batch_size, self.z1_dim), self.dtype)
        return self._mean

    @property
    def stddev(self):
        if self._stddev is None:
            self._stddev = jnp.full(
                (self.batch_size, self.z1_dim), self.std, self.dtype)
        return self._stddev

    def log_prob(self, x, out_dtype=None):
        return prior_log_prob(x, self.std, out_dtype=out_dtype)

    def log_prob_sum(self, x, out_dtype=jnp.float32):
        return prior_log_prob_sum(x, self.std, out_dtype=out_dtype)

    def sample(self, key):
        eps = jax.random.normal(key, (self.batch_size, self.z1_dim), self.dtype)
        return self.std * eps  # mean is zero


class Prior:
    def __init__(self, z1_dim, std=1.0):
        self.z1_dim = z1_dim
        self.std = std

    def __call__(self, batch_size):
        return PriorNormal(batch_size, self.z1_dim, self.std)


if __name__ == "__main__":
    key = jax.random.PRNGKey(0)
    k1, k2, k3, k4 = jax.random.split(key, 4)

    batch_size, z1_dim, std = 2, 32, 1.0

    prior = Prior(z1_dim, std=std)
    dist = prior(batch_size)

    # Forward semantics: zeros mean, constant std, correct shape/dtype.
    mu = jax.block_until_ready(dist.mean)
    sigma = jax.block_until_ready(dist.stddev)
    assert mu.shape == (batch_size, z1_dim) and sigma.shape == (batch_size, z1_dim)
    assert mu.dtype == jnp.float32 and sigma.dtype == jnp.float32
    assert bool(jnp.all(mu == 0.0))
    assert bool(jnp.allclose(sigma, std))

    # Small-shape log_prob (jnp bailout path) vs closed form (std = 1).
    x = jax.random.normal(k1, (batch_size, z1_dim), jnp.float32)
    lp = jax.block_until_ready(dist.log_prob(x))
    lp_ref = -0.5 * (x / std) ** 2 - math.log(std) - _HALF_LOG_2PI
    assert lp.shape == x.shape and lp.dtype == x.dtype
    assert bool(jnp.allclose(lp, lp_ref, atol=1e-5, rtol=1e-5))

    # Pallas elementwise path: lane-aligned, multi-step grid (force Pallas).
    x3 = jax.random.normal(k3, (256, 32), jnp.float32)
    lp3 = jax.block_until_ready(prior_log_prob(x3, 1.0, min_pallas_elems=0))
    lp3_ref = -0.5 * x3 ** 2 - _HALF_LOG_2PI
    assert bool(jnp.allclose(lp3, lp3_ref, atol=1e-5, rtol=1e-5))

    # Pallas elementwise path: non-unit std + unaligned shape (pad + slice-back).
    x2 = jax.random.normal(k2, (37, 50), jnp.float32)
    lp2 = jax.block_until_ready(prior_log_prob(x2, 0.5, min_pallas_elems=0))
    lp2_ref = -0.5 * (x2 / 0.5) ** 2 - math.log(0.5) - _HALF_LOG_2PI
    assert bool(jnp.allclose(lp2, lp2_ref, atol=1e-5, rtol=1e-5))

    # Pallas elementwise path: bf16 in / bf16 out (native-dtype streaming).
    xb = jax.random.normal(k4, (256, 128), jnp.bfloat16)
    lpb = jax.block_until_ready(
        prior_log_prob(xb, 1.0, out_dtype=jnp.bfloat16, min_pallas_elems=0))
    lpb_ref = -0.5 * xb.astype(jnp.float32) ** 2 - _HALF_LOG_2PI
    assert lpb.dtype == jnp.bfloat16
    assert bool(jnp.allclose(lpb.astype(jnp.float32), lpb_ref, atol=5e-2, rtol=5e-2))

    # Fused reduction path (sum over latent axis inside the kernel).
    lps = jax.block_until_ready(prior_log_prob_sum(x2, 0.5, min_pallas_elems=0))
    lps_ref = lp2_ref.sum(-1)
    assert lps.shape == (37,)
    assert bool(jnp.allclose(lps, lps_ref, atol=1e-4, rtol=1e-4))

    # sample() sanity: shape/dtype only.
    s = jax.block_until_ready(dist.sample(key))
    assert s.shape == (batch_size, z1_dim) and s.dtype == jnp.float32

    print("KERNEL_OK")
</pallas_src>

<mosaic_0001>
module attributes {stable_mosaic.version = 11 : i64} {
  func.func @_log_prob_kernel(%arg0: i32, %arg1: memref<16x128xf32, #tpu.memory_space<vmem>>, %arg2: memref<16x128xf32, #tpu.memory_space<vmem>>) attributes {dimension_semantics = [#tpu.dimension_semantics<parallel>], iteration_bounds = array<i64: 4>, scalar_prefetch = 0 : i64, scratch_operands = 0 : i64, tpu.core_type = #tpu.core_type<tc>, window_params = [{transform_indices = @transform_0, window_bounds = array<i64: 16, 128>}, {transform_indices = @transform_1, window_bounds = array<i64: 16, 128>}]} {
    %c0 = arith.constant 0 : index
    %c0_0 = arith.constant 0 : index
    %0 = vector.load %arg1[%c0, %c0_0] : memref<16x128xf32, #tpu.memory_space<vmem>>, vector<16x128xf32>
    %1 = arith.mulf %0, %0 : vector<16x128xf32>
    %cst = arith.constant -5.000000e-01 : f32
    %2 = vector.broadcast %cst : f32 to vector<16x128xf32>
    %3 = arith.mulf %1, %2 : vector<16x128xf32>
    %cst_1 = arith.constant -0.918938517 : f32
    %4 = vector.broadcast %cst_1 : f32 to vector<16x128xf32>
    %5 = arith.addf %3, %4 : vector<16x128xf32>
    %c0_2 = arith.constant 0 : index
    %c0_3 = arith.constant 0 : index
    %6 = vector.load %arg2[%c0_2, %c0_3] : memref<16x128xf32, #tpu.memory_space<vmem>>, vector<16x128xf32>
    tpu.vector_store %arg2[%c0_2, %c0_3], %5 {strides = array<i32>} : memref<16x128xf32, #tpu.memory_space<vmem>>, vector<16x128xf32>,
    return
  }
  func.func @transform_0(%arg0: i32) -> (i32, i32) {
    %c0_i32 = arith.constant 0 : i32
    %c0_i32_0 = arith.constant 0 : i32
    return %arg0, %c0_i32 : i32, i32
  }
  func.func @transform_1(%arg0: i32) -> (i32, i32) {
    %c0_i32 = arith.constant 0 : i32
    %c0_i32_0 = arith.constant 0 : i32
    return %arg0, %c0_i32 : i32, i32
  }
}

</mosaic_0001>

<llo_original>
// kernel: tpu_custom_call.1
$region0: #{tpu_custom_call.1}
  #allocation0 [shape = 'u32[]', space=smem, size = 0x4, offset = 0x4, fixed_abs, tag = 'smem constant byte address 0x4 - core index']
  #allocation1 [shape = 'u32[144,128]{1,0:T(1,128)}', space=vmem, size = 0x12000, scoped, tag = 'internal scratch']
  %s0 = inlined_call_operand.hbm [shape: f32[64,128], index: 0, kind: input, shape index: {}]
  %s1 = inlined_call_operand.hbm [shape: f32[64,128], index: 1, kind: output, shape index: {}]
  %s2 = sld [smem:[#allocation0]]
  $region41: #{tpu_custom_call.1} parent=0
    _
  %s4 = ssub.s32 1, %s2
  %s5 = scalar_select 0, %s4, %s2
  $region1: #{tpu_custom_call.1} parent=0
    #allocation2 [shape = 'u8[16384]{0}', space=vmem, size = 0x4000, scoped, tag = 'input window, operand 0']
    #allocation3 [shape = 's32[2]{0}', space=sflag, size = 0x8, scoped, tag = 'scoped memory for tpu_custom_call.1']
    #allocation4 [shape = 's32[2]{0}', space=sflag, size = 0x8, scoped, tag = 'scoped memory for tpu_custom_call.1']
    #allocation5 [shape = 'u8[16384]{0}', space=vmem, size = 0x4000, scoped, tag = 'output window, operand 0']
    %6 = vsyncpa [#allocation3], 0
    %s7 = scalar_lea.sflag [#allocation3], 1
    %8 = vsyncpa %s7, 0
    %9 = vsyncpa [#allocation4], 0
    %s10 = scalar_lea.sflag [#allocation4], 1
    %11 = vsyncpa %s10, 0
    loop: start=0, step=1, limit=6
    $region2: #{tpu_custom_call.1} parent=1 // loop_pre_header
      _
    $region3: #{tpu_custom_call.1} parent=1 // loop_header
      %s13 = sphi 0, %s17
      %p14 = scmp.ge.s32.totalorder %s13, 6
      %s23 = sphi 0, %s25
      %s26 = sphi 0, %s23
      %s27 = sphi 0, %s26
      %s43 = sphi 0, %s27
      %s49 = sphi 0, %s51
      %s52 = sphi 0, %s49
      %s53 = sphi 0, %s52
      %s69 = sphi 0, %s53
    $region4: #{tpu_custom_call.1} parent=1 // loop_header_branch
      %16 = sbr.rel (%p14) target = $region8
    $region5: #{tpu_custom_call.1} parent=1 // loop_body
      %s18 = ssub.s32 %s13, 1
      %s19 = ssub.s32 %s13, 2
      %s20 = sadd.s32 %s13, 1
      %s21 = ssub.s32 %s13, %s20
      %p22 = scmp.eq.s32.totalorder %s21, 0
      %s24 = sadd.s32 %s23, 1
      %s25 = scalar_select %p22, %s23, %s24
      %p28 = pneg %p22
      %p29 = scmp.eq.s32.totalorder %s13, 3
      %p30 = por %p28, %p29
      %p31 = scmp.ne.s32.totalorder %s23, %s26
      %p32 = scmp.eq.s32.totalorder %s13, 0
      %p33 = por %p31, %p32
      %p34 = scmp.ne.s32.totalorder %s23, %s26
      %p35 = scmp.eq.s32.totalorder %s18, 3
      %p36 = por %p34, %p35
      %p37 = scmp.ne.s32.totalorder %s26, %s27
      %p38 = scmp.eq.s32.totalorder %s18, 0
      %p39 = por %p37, %p38
      %p40 = scmp.ne.s32.totalorder %s26, %s27
      %p41 = scmp.eq.s32.totalorder %s19, 3
      %p42 = por %p40, %p41
      %p44 = scmp.ne.s32.totalorder %s27, %s43
      %p45 = scmp.eq.s32.totalorder %s19, 0
      %p46 = por %p44, %p45
      %s47 = ssub.s32 %s13, %s20
      %p48 = scmp.eq.s32.totalorder %s47, 0
      %s50 = sadd.s32 %s49, 1
      %s51 = scalar_select %p48, %s49, %s50
      %p54 = pneg %p48
      %p55 = scmp.eq.s32.totalorder %s13, 3
      %p56 = por %p54, %p55
      %p57 = scmp.ne.s32.totalorder %s49, %s52
      %p58 = scmp.eq.s32.totalorder %s13, 0
      %p59 = por %p57, %p58
      %p60 = scmp.ne.s32.totalorder %s49, %s52
      %p61 = scmp.eq.s32.totalorder %s18, 3
      %p62 = por %p60, %p61
      %p63 = scmp.ne.s32.totalorder %s52, %s53
      %p64 = scmp.eq.s32.totalorder %s18, 0
      %p65 = por %p63, %p64
      %p66 = scmp.ne.s32.totalorder %s52, %s53
      %p67 = scmp.eq.s32.totalorder %s19, 3
      %p68 = por %p66, %p67
      %p70 = scmp.ne.s32.totalorder %s53, %s69
      %p71 = scmp.eq.s32.totalorder %s19, 0
      %p72 = por %p70, %p71
      %p73 = scmp.le.s32.totalorder 1, %s13
      %p74 = scmp.lt.s32.totalorder %s13, 5
      %p75 = pnand %p73, %p74
      %p76 = pneg %p75
      // Predicated region
      $region9: #{tpu_custom_call.1} parent=5 // pred_check
        _
      $region10: #{tpu_custom_call.1} parent=5 // pred_check_branch
        %78 = sbr.rel (%p75) target = $region12
      $region11: #{tpu_custom_call.1} parent=5 // pred_region
        %s79 = ssub.s32 %s13, 1
      $region12: #{tpu_custom_call.1} parent=5 // pred_fallthru
        _
      %p80 = scmp.lt.s32.totalorder %s13, 4
      // Predicated region
      $region13: #{tpu_custom_call.1} parent=5 // pred_check
        %p81 = pneg %p80
      $region14: #{tpu_custom_call.1} parent=5 // pred_check_branch
        %83 = sbr.rel (%p81) target = $region16
      $region15: #{tpu_custom_call.1} parent=5 // pred_region
        // Predicated region
        $region17: #{tpu_custom_call.1} parent=15 // pred_check
          %p84 = pneg %p33
        $region18: #{tpu_custom_call.1} parent=15 // pred_check_branch
          %86 = sbr.rel (%p84) target = $region20
        $region19: #{tpu_custom_call.1} parent=15 // pred_region
          %s87 = sand.u32 %s23, 1
          %s88 = scalar_lea.sflag [#allocation3], %s87
          %s89 = sand.u32 %s23, 1
          %s90 = smul.addr %s89, 16
          %s91 = scalar_lea.vmem [#allocation2], %s90
          %s92 = smul.u32 2, %s13
          %s94 = ssub.s32 256, 256
          %95 = vsyncadd %s88, %s94
          %s96 = smul.addr %s92, 128
          %s97 = scalar_lea.hbm %s0, %s96
          %s98 = sshll.u32 %s91, 4
          %s99 = int_to_ptr.vmem [resolvable:$true] %s98
          %104 = dma.hbm_to_vmem [thread:$0]  %s97, 256, %s99, %s88, 128, 128, 8
        $region20: #{tpu_custom_call.1} parent=15 // pred_fallthru
          _
      $region16: #{tpu_custom_call.1} parent=5 // pred_fallthru
        _
      %p105 = scmp.le.s32.totalorder 1, %s13
      %p106 = scmp.lt.s32.totalorder %s13, 5
      %p107 = pnand %p105, %p106
      %p108 = pneg %p107
      // Predicated region
      $region21: #{tpu_custom_call.1} parent=5 // pred_check
        _
      $region22: #{tpu_custom_call.1} parent=5 // pred_check_branch
        %110 = sbr.rel (%p107) target = $region24
      $region23: #{tpu_custom_call.1} parent=5 // pred_region
        %s111 = ssub.s32 %s13, 1
        %s112 = sand.u32 %s26, 1
        %s113 = scalar_lea.sflag [#allocation3], %s112
        %s114 = sand.u32 %s26, 1
        %s115 = smul.addr %s114, 16
        %s116 = scalar_lea.vmem [#allocation2], %s115
        // Predicated region
        $region25: #{tpu_custom_call.1} parent=23 // pred_check
          %p117 = pneg %p39
        $region26: #{tpu_custom_call.1} parent=23 // pred_check_branch
          %119 = sbr.rel (%p117) target = $region28
        $region27: #{tpu_custom_call.1} parent=23 // pred_region
          %120 = dma.done %s113, 256
        $region28: #{tpu_custom_call.1} parent=23 // pred_fallthru
          _
        %s121 = sand.u32 %s26, 1
        %s122 = scalar_lea.sflag [#allocation3], %s121
        %s123 = sand.u32 %s26, 1
        %s124 = smul.addr %s123, 16
        %s125 = scalar_lea.vmem [#allocation2], %s124
        %p126 = pneg %p39
        %p127 = pneg %p36
        %p128 = pneg %p65
        %p129 = pneg %p62
        %s130 = sand.u32 %s52, 1
        %s131 = scalar_lea.sflag [#allocation4], %s130
        %s132 = sand.u32 %s52, 1
        %s133 = smul.addr %s132, 16
        %s134 = scalar_lea.vmem [#allocation5], %s133
        %s135 = smul.u32 2, %s18
        %s136 = smul.u32 2, %s18
        %v137 = vld [vmem:[%s116] sm:$0xff]
        %v138 = vld [vmem:[%s116 + $0x8] sm:$0xff]
        %v139 = vmul.f32 %v137, %v137
        %v140 = vmul.f32 %v138, %v138
        %v141 = vmul.f32 %v139, -0.5
        %v142 = vmul.f32 %v140, -0.5
        %v143 = vadd.f32 %v141, -0.9189385
        %v144 = vadd.f32 %v142, -0.9189385
        %145 = vst [vmem:[%s134] sm:$0xff] %v143
        %146 = vst [vmem:[%s134 + $0x8] sm:$0xff] %v144
        %s147 = sand.u32 %s52, 1
        %s148 = scalar_lea.sflag [#allocation4], %s147
        %s149 = sand.u32 %s52, 1
        %s150 = smul.addr %s149, 16
        %s151 = scalar_lea.vmem [#allocation5], %s150
        // Predicated region
        $region29: #{tpu_custom_call.1} parent=23 // pred_check
          %p152 = pneg %p62
        $region30: #{tpu_custom_call.1} parent=23 // pred_check_branch
          %154 = sbr.rel (%p152) target = $region32
        $region31: #{tpu_custom_call.1} parent=23 // pred_region
          %s155 = smul.u32 2, %s18
          %s157 = ssub.s32 256, 256
          %158 = vsyncadd %s148, %s157
          %s159 = smul.addr %s155, 128
          %s160 = scalar_lea.hbm %s1, %s159
          %s161 = sshll.u32 %s151, 4
          %s162 = int_to_ptr.vmem [resolvable:$true] %s161
          %167 = dma.vmem_to_hbm [thread:$0]  %s162, 256, %s160, %s148, 128, 128, 8
        $region32: #{tpu_custom_call.1} parent=23 // pred_fallthru
          _
      $region24: #{tpu_custom_call.1} parent=5 // pred_fallthru
        _
      %p168 = scmp.le.s32.totalorder 2, %s13
      // Predicated region
      $region33: #{tpu_custom_call.1} parent=5 // pred_check
        %p169 = pneg %p168
      $region34: #{tpu_custom_call.1} parent=5 // pred_check_branch
        %171 = sbr.rel (%p169) target = $region36
      $region35: #{tpu_custom_call.1} parent=5 // pred_region
        %s172 = ssub.s32 %s13, 2
        // Predicated region
        $region37: #{tpu_custom_call.1} parent=35 // pred_check
          %p173 = pneg %p68
        $region38: #{tpu_custom_call.1} parent=35 // pred_check_branch
          %175 = sbr.rel (%p173) target = $region40
        $region39: #{tpu_custom_call.1} parent=35 // pred_region
          %s176 = sand.u32 %s53, 1
          %s177 = scalar_lea.sflag [#allocation4], %s176
          %s178 = sand.u32 %s53, 1
          %s179 = smul.addr %s178, 16
          %s180 = scalar_lea.vmem [#allocation5], %s179
          %181 = dma.done %s177, 256
        $region40: #{tpu_custom_call.1} parent=35 // pred_fallthru
          _
      $region36: #{tpu_custom_call.1} parent=5 // pred_fallthru
        _
    $region6: #{tpu_custom_call.1} parent=1 // loop_footer
      %s17 = sadd.s32 1, %s13
    $region7: #{tpu_custom_call.1} parent=1 // loop_footer_branch
      %12 = sbr.rel target = $region3
    $region8: #{tpu_custom_call.1} parent=1 // loop_exit
      _
    %182 = vsyncpa [#allocation3], 1
    %s183 = scalar_lea.sflag [#allocation3], 1
    %184 = vsyncpa %s183, 1
    %185 = vsyncpa [#allocation4], 1
    %s186 = scalar_lea.sflag [#allocation4], 1
    %187 = vsyncpa %s186, 1

</llo_original>
